<compile_context>
chip_gen: v7x
topology: tpu7x:2x2x1
jax: 0.10.0
libtpu: 0.0.40
codegen_flags: <defaults>
</compile_context>

<pallas_src>
import functools

import jax
import jax.numpy as jnp
from jax.experimental import pallas as pl
from jax.experimental.pallas import tpu as pltpu


# ---------------------------------------------------------------------------
# Path A: x fits in one VMEM block -> single fused kernel, one grid step.
# ---------------------------------------------------------------------------
def _single_step_kernel(x_ref, y_ref, o_ref):
    xt = x_ref[...].astype(jnp.float32)
    yv = y_ref[...].astype(jnp.float32)
    o_ref[...] = (yv * yv + jnp.sum(xt * xt)).astype(o_ref.dtype)


# ---------------------------------------------------------------------------
# Path B (large x): streamed sum-of-squares reduction into per-split
# (8, xc) partials accumulated directly in the output block.
# ---------------------------------------------------------------------------
def _partial_sumsq_kernel(x_ref, p_ref, *, total_rows, block_rows,
                          steps_per_split, needs_mask):
    c = pl.program_id(0)   # row split (TensorCore on v7x)
    i = pl.program_id(1)   # reduction step within the split
    xc = x_ref.shape[1]

    xt = x_ref[...].astype(jnp.float32)
    if needs_mask:
        # Zero rows past the end of x (tail block / fully-clamped blocks).
        row_ids = jax.lax.broadcasted_iota(jnp.int32, (block_rows, 1), 0)
        start = (c * steps_per_split + i) * block_rows
        xt = jnp.where(start + row_ids < total_rows, xt, 0.0)

    sq = xt * xt
    # Fold groups of 8 sublane rows into one (8, xc) partial: free reshape
    # (does not cross the (8,128) tile) + pure cross-vreg VPU adds.
    partial = jnp.sum(sq.reshape(block_rows // 8, 8, xc), axis=0)

    @pl.when(i == 0)
    def _():
        p_ref[...] = partial          # first step: direct write, no zero-init

    @pl.when(i != 0)
    def _():
        p_ref[...] += partial


def _sumsq_partials(x, *, block_rows, num_splits):
    xr, xc = x.shape
    num_blocks = pl.cdiv(xr, block_rows)
    num_splits = max(1, min(int(num_splits), num_blocks))
    steps = pl.cdiv(num_blocks, num_splits)
    clamp_needed = num_splits * steps > num_blocks
    needs_mask = clamp_needed or (xr % block_rows != 0)

    if clamp_needed:
        # Extra steps on the last split re-read the last valid block and are
        # fully masked in-kernel.
        def x_index_map(c, i):
            return (jnp.minimum(c * steps + i, num_blocks - 1), 0)
    else:
        def x_index_map(c, i):
            return (c * steps + i, 0)

    kernel = functools.partial(
        _partial_sumsq_kernel,
        total_rows=xr,
        block_rows=block_rows,
        steps_per_split=steps,
        needs_mask=needs_mask,
    )

    return pl.pallas_call(
        kernel,
        out_shape=jax.ShapeDtypeStruct((num_splits * 8, xc), jnp.float32),
        grid_spec=pltpu.PrefetchScalarGridSpec(
            num_scalar_prefetch=0,
            grid=(num_splits, steps),
            in_specs=[pl.BlockSpec((block_rows, xc), x_index_map)],
            # Per-split (8, xc) partial stays resident across the reduction
            # axis; written back when the split index changes / at the end.
            out_specs=pl.BlockSpec((8, xc), lambda c, i: (c, 0)),
        ),
        compiler_params=pltpu.CompilerParams(
            dimension_semantics=("parallel", "arbitrary")),
    )(x)


# ---------------------------------------------------------------------------
# Tiny epilogue kernel: out = y*y + sum(partials).
# ---------------------------------------------------------------------------
def _combine_kernel(p_ref, y_ref, o_ref):
    yv = y_ref[...].astype(jnp.float32)
    o_ref[...] = (yv * yv + jnp.sum(p_ref[...])).astype(o_ref.dtype)


def _combine(partials, y):
    pr, pc = partials.shape
    yr, yc = y.shape
    return pl.pallas_call(
        _combine_kernel,
        out_shape=jax.ShapeDtypeStruct((yr, yc), y.dtype),
        grid_spec=pltpu.PrefetchScalarGridSpec(
            num_scalar_prefetch=0,
            grid=(1,),
            in_specs=[pl.BlockSpec((pr, pc), lambda i: (0, 0)),
                      pl.BlockSpec((yr, yc), lambda i: (0, 0))],
            out_specs=pl.BlockSpec((yr, yc), lambda i: (0, 0)),
        ),
        compiler_params=pltpu.CompilerParams(
            dimension_semantics=("arbitrary",)),
    )(partials, y)


def _detect_num_tensorcores():
    """Best-effort TensorCore count per chip (2 on v7x); safe fallback to 1."""
    try:
        info = pltpu.get_tpu_info()
        for name in ("num_tensorcores", "tensorcore_count", "num_cores",
                     "core_count", "cores_per_chip"):
            v = getattr(info, name, None)
            if isinstance(v, int) and 1 <= v <= 8:
                return v
    except Exception:
        pass
    return 1


def test_module_forward(x, y, *, max_block_rows=4096, num_row_splits=None):
    """Pallas equivalent of TestModule.forward(): (x**2).sum() + y**2."""
    xr, xc = x.shape
    yr, yc = y.shape

    # y / output stay resident as single VMEM blocks (y is a small parameter).
    # TODO(synk): tile y / the output over rows if y ever grows to multi-MiB.

    if xr <= max_block_rows:
        # Collapse the grid: one step, full-array blocks, fully fused.
        return pl.pallas_call(
            _single_step_kernel,
            out_shape=jax.ShapeDtypeStruct((yr, yc), y.dtype),
            grid_spec=pltpu.PrefetchScalarGridSpec(
                num_scalar_prefetch=0,
                grid=(1,),
                in_specs=[pl.BlockSpec((xr, xc), lambda i: (0, 0)),
                          pl.BlockSpec((yr, yc), lambda i: (0, 0))],
                out_specs=pl.BlockSpec((yr, yc), lambda i: (0, 0)),
            ),
            compiler_params=pltpu.CompilerParams(
                dimension_semantics=("arbitrary",)),
        )(x, y)

    # Large-x path: big row tiles (2 MiB f32/block, double-buffered),
    # optional per-TensorCore row split on v7x.
    block_rows = max(8, (max_block_rows // 8) * 8)
    if num_row_splits is None:
        num_row_splits = _detect_num_tensorcores()
    partials = _sumsq_partials(x, block_rows=block_rows,
                               num_splits=num_row_splits)
    return _combine(partials, y)


if __name__ == "__main__":
    key = jax.random.PRNGKey(0)
    kx, ky = jax.random.split(key)

    # Deterministic "parameters" (module __init__ just wraps given tensors).
    x = jax.random.normal(kx, (32, 128), dtype=jnp.float32)
    y = jax.random.normal(ky, (8, 128), dtype=jnp.float32)

    out = jax.block_until_ready(test_module_forward(x, y))
    ref = jnp.sum(x ** 2) + y ** 2
    assert out.shape == ref.shape
    assert jnp.allclose(out, ref, rtol=1e-5, atol=1e-4), "small-path mismatch"

    # Also exercise the tiled large-x path (ragged tail + 2-way row split)
    # with still-small data by shrinking the tile.
    x2 = jax.random.normal(kx, (600, 128), dtype=jnp.float32)
    out2 = jax.block_until_ready(
        test_module_forward(x2, y, max_block_rows=256, num_row_splits=2))
    ref2 = jnp.sum(x2 ** 2) + y ** 2
    assert jnp.allclose(out2, ref2, rtol=1e-5, atol=1e-3), "tiled-path mismatch"

    print("KERNEL_OK")
</pallas_src>

<mosaic_0001>
module attributes {stable_mosaic.version = 11 : i64} {
  func.func @_single_step_kernel(%arg0: i32, %arg1: memref<32x128xf32, #tpu.memory_space<vmem>>, %arg2: memref<8x128xf32, #tpu.memory_space<vmem>>, %arg3: memref<8x128xf32, #tpu.memory_space<vmem>>) attributes {dimension_semantics = [#tpu.dimension_semantics<arbitrary>], iteration_bounds = array<i64: 1>, scalar_prefetch = 0 : i64, scratch_operands = 0 : i64, tpu.core_type = #tpu.core_type<tc>, window_params = [{pipeline_mode = #tpu.pipeline_mode<synchronous>, transform_indices = @transform_0, window_bounds = array<i64: 32, 128>}, {pipeline_mode = #tpu.pipeline_mode<synchronous>, transform_indices = @transform_1, window_bounds = array<i64: 8, 128>}, {pipeline_mode = #tpu.pipeline_mode<synchronous>, transform_indices = @transform_2, window_bounds = array<i64: 8, 128>}]} {
    %c0 = arith.constant 0 : index
    %c0_0 = arith.constant 0 : index
    %0 = vector.load %arg1[%c0, %c0_0] : memref<32x128xf32, #tpu.memory_space<vmem>>, vector<32x128xf32>
    %c0_1 = arith.constant 0 : index
    %c0_2 = arith.constant 0 : index
    %1 = vector.load %arg2[%c0_1, %c0_2] : memref<8x128xf32, #tpu.memory_space<vmem>>, vector<8x128xf32>
    %2 = arith.mulf %1, %1 : vector<8x128xf32>
    %3 = arith.mulf %0, %0 : vector<32x128xf32>
    %4 = vector.shape_cast %3 : vector<32x128xf32> to vector<1x32x128xf32>
    %cst = arith.constant dense<0.000000e+00> : vector<1xf32>
    %5 = vector.multi_reduction <add>, %4, %cst [1, 2] : vector<1x32x128xf32> to vector<1xf32>
    %6 = vector.shape_cast %5 : vector<1xf32> to vector<1x1x1xf32>
    %7 = vector.extract %6[0, 0, 0] : f32 from vector<1x1x1xf32>
    %8 = vector.broadcast %7 : f32 to vector<8x128xf32>
    %9 = arith.addf %2, %8 : vector<8x128xf32>
    %c0_3 = arith.constant 0 : index
    %c0_4 = arith.constant 0 : index
    %10 = vector.load %arg3[%c0_3, %c0_4] : memref<8x128xf32, #tpu.memory_space<vmem>>, vector<8x128xf32>
    tpu.vector_store %arg3[%c0_3, %c0_4], %9 {strides = array<i32>} : memref<8x128xf32, #tpu.memory_space<vmem>>, vector<8x128xf32>,
    return
  }
  func.func @transform_0(%arg0: i32) -> (i32, i32) {
    %c0_i32 = arith.constant 0 : i32
    %c0_i32_0 = arith.constant 0 : i32
    %c0_i32_1 = arith.constant 0 : i32
    return %c0_i32, %c0_i32_0 : i32, i32
  }
  func.func @transform_1(%arg0: i32) -> (i32, i32) {
    %c0_i32 = arith.constant 0 : i32
    %c0_i32_0 = arith.constant 0 : i32
    %c0_i32_1 = arith.constant 0 : i32
    return %c0_i32, %c0_i32_0 : i32, i32
  }
  func.func @transform_2(%arg0: i32) -> (i32, i32) {
    %c0_i32 = arith.constant 0 : i32
    %c0_i32_0 = arith.constant 0 : i32
    %c0_i32_1 = arith.constant 0 : i32
    return %c0_i32, %c0_i32_0 : i32, i32
  }
}

</mosaic_0001>

<llo_original>
// kernel: tpu_custom_call.1
$region0: #{tpu_custom_call.1}
  #allocation0 [shape = 'u32[]', space=smem, size = 0x4, offset = 0x4, fixed_abs, tag = 'smem constant byte address 0x4 - core index']
  #allocation1 [shape = 'u32[144,128]{1,0:T(1,128)}', space=vmem, size = 0x12000, scoped, tag = 'internal scratch']
  %s0 = inlined_call_operand.hbm [shape: f32[32,128], index: 0, kind: input, shape index: {}]
  %s1 = inlined_call_operand.hbm [shape: f32[8,128], index: 1, kind: input, shape index: {}]
  %s2 = inlined_call_operand.hbm [shape: f32[8,128], index: 2, kind: output, shape index: {}]
  %s3 = sld [smem:[#allocation0]]
  $region26: #{tpu_custom_call.1} parent=0
    _
  %s5 = ssub.s32 1, %s3
  %s6 = scalar_select 0, %s5, %s3
  $region1: #{tpu_custom_call.1} parent=0
    #allocation2 [shape = 'u8[16384]{0}', space=vmem, size = 0x4000, scoped, tag = 'input window, operand 0, single buffered']
    #allocation3 [shape = 's32[1]{0}', space=sflag, size = 0x4, scoped, tag = 'scoped memory for tpu_custom_call.1']
    #allocation4 [shape = 's32[1]{0}', space=sflag, size = 0x4, scoped, tag = 'scoped memory for tpu_custom_call.1']
    #allocation5 [shape = 'u8[4096]{0}', space=vmem, size = 0x1000, scoped, tag = 'input window, operand 1, single buffered']
    #allocation6 [shape = 's32[1]{0}', space=sflag, size = 0x4, scoped, tag = 'scoped memory for tpu_custom_call.1']
    #allocation7 [shape = 'u8[4096]{0}', space=vmem, size = 0x1000, scoped, tag = 'output window, operand 0, single buffered']
    %7 = vsyncpa [#allocation3], 0
    %8 = vsyncpa [#allocation6], 0
    %9 = vsyncpa [#allocation4], 0
    // Predicated region
    $region2: #{tpu_custom_call.1} parent=1 // pred_check
      _
    $region3: #{tpu_custom_call.1} parent=1 // pred_check_branch
      %11 = sbr.rel (0) target = $region5
    $region4: #{tpu_custom_call.1} parent=1 // pred_region
      %s13 = ssub.s32 512, 512
      %14 = vsyncadd [#allocation3], %s13
      %s15 = sshll.u32 [#allocation2], 4
      %s16 = int_to_ptr.vmem [resolvable:$true] %s15
      %21 = dma.hbm_to_vmem [thread:$0]  %s0, 512, %s16, [#allocation3], 128, 128, 8
    $region5: #{tpu_custom_call.1} parent=1 // pred_fallthru
      _
    // Predicated region
    $region6: #{tpu_custom_call.1} parent=1 // pred_check
      _
    $region7: #{tpu_custom_call.1} parent=1 // pred_check_branch
      %23 = sbr.rel (0) target = $region9
    $region8: #{tpu_custom_call.1} parent=1 // pred_region
      %s25 = ssub.s32 128, 128
      %26 = vsyncadd [#allocation6], %s25
      %s28 = sshll.u32 [#allocation5], 4
      %s29 = int_to_ptr.vmem [resolvable:$true] %s28
      %31 = dma.hbm_to_vmem [thread:$0]  %s1, 128, %s29, [#allocation6]
    $region9: #{tpu_custom_call.1} parent=1 // pred_fallthru
      _
    // Predicated region
    $region10: #{tpu_custom_call.1} parent=1 // pred_check
      _
    $region11: #{tpu_custom_call.1} parent=1 // pred_check_branch
      %33 = sbr.rel (0) target = $region13
    $region12: #{tpu_custom_call.1} parent=1 // pred_region
      %34 = dma.done [#allocation3], 512
    $region13: #{tpu_custom_call.1} parent=1 // pred_fallthru
      _
    // Predicated region
    $region14: #{tpu_custom_call.1} parent=1 // pred_check
      _
    $region15: #{tpu_custom_call.1} parent=1 // pred_check_branch
      %36 = sbr.rel (0) target = $region17
    $region16: #{tpu_custom_call.1} parent=1 // pred_region
      %37 = dma.done [#allocation6], 128
    $region17: #{tpu_custom_call.1} parent=1 // pred_fallthru
      _
    %v38 = vld [vmem:[#allocation2] sm:$0xff]
    %v39 = vld [vmem:[#allocation2 + $0x8] sm:$0xff]
    %v40 = vld [vmem:[#allocation2 + $0x10] sm:$0xff]
    %v41 = vld [vmem:[#allocation2 + $0x18] sm:$0xff]
    %v42 = vld [vmem:[#allocation5] sm:$0xff]
    %v43 = vmul.f32 %v42, %v42
    %v44 = vmul.f32 %v38, %v38
    %v45 = vmul.f32 %v39, %v39
    %v46 = vmul.f32 %v40, %v40
    %v47 = vmul.f32 %v41, %v41
    %v48 = vadd.f32 %v44, %v45
    %v49 = vadd.f32 %v48, %v46
    %v50 = vadd.f32 %v49, %v47
    %51 = vadd.xlane.f32.xlu0 %v50
    %v52 = vpop.xlane.xlu0 %51
    %v53 = vrot.slane %v52, 4
    %v54 = vadd.f32 %v52, %v53
    %v55 = vrot.slane %v54, 2
    %v56 = vadd.f32 %v54, %v55
    %v57 = vrot.slane %v56, 1
    %v58 = vadd.f32 %v56, %v57
    %s59 = vtos %v58
    %v60 = vstv %s59
    %v61 = vadd.f32 %v43, %v60
    %62 = vst [vmem:[#allocation7] sm:$0xff] %v61
    // Predicated region
    $region18: #{tpu_custom_call.1} parent=1 // pred_check
      _
    $region19: #{tpu_custom_call.1} parent=1 // pred_check_branch
      %64 = sbr.rel (0) target = $region21
    $region20: #{tpu_custom_call.1} parent=1 // pred_region
      %s66 = ssub.s32 128, 128
      %67 = vsyncadd [#allocation4], %s66
      %s69 = sshll.u32 [#allocation7], 4
      %s70 = int_to_ptr.vmem [resolvable:$true] %s69
      %72 = dma.vmem_to_hbm [thread:$0]  %s70, 128, %s2, [#allocation4]
    $region21: #{tpu_custom_call.1} parent=1 // pred_fallthru
      _
    // Predicated region
    $region22: #{tpu_custom_call.1} parent=1 // pred_check
      _
    $region23: #{tpu_custom_call.1} parent=1 // pred_check_branch
      %74 = sbr.rel (0) target = $region25
    $region24: #{tpu_custom_call.1} parent=1 // pred_region
      %75 = dma.done [#allocation4], 128
    $region25: #{tpu_custom_call.1} parent=1 // pred_fallthru
      _
    %76 = vsyncpa [#allocation3], 1
    %77 = vsyncpa [#allocation6], 1
    %78 = vsyncpa [#allocation4], 1

</llo_original>
